<compile_context>
chip_gen: v6e
topology: v6e:2x2x1
jax: 0.10.0
libtpu: 0.0.40
codegen_flags: <defaults>
</compile_context>

<pallas_src>
import functools

import jax
import jax.numpy as jnp
from jax.experimental import pallas as pl
from jax.experimental.pallas import tpu as pltpu

_NEG_INF = -1e30  # finite "masked" logit value (avoids inf arithmetic on padded lanes)


def _round_up(x, m):
    return (x + m - 1) // m * m


def _gelu_exact(x):
    # Matches torch.nn.GELU() default (erf formulation, approximate='none').
    return 0.5 * x * (1.0 + jax.lax.erf(x * 0.7071067811865476))


def _mlp_logsoftmax_kernel(n_layers, n_actions, x_ref, *refs):
    """refs = (w0, b0, w1, b1, ..., w{L-1}, b{L-1}, out_ref). Shapes are lane-padded."""
    out_ref = refs[-1]
    param_refs = refs[:-1]

    h = x_ref[...].astype(jnp.float32)
    for j in range(n_layers):
        w = param_refs[2 * j][...]
        b = param_refs[2 * j + 1][...].astype(jnp.float32)
        lhs = h if w.dtype == h.dtype else h.astype(w.dtype)  # bf16 weights -> bf16 MXU path
        h = jnp.dot(lhs, w, preferred_element_type=jnp.float32) + b
        if j < n_layers - 1:  # hidden layers use GELU, last layer is Identity
            h = _gelu_exact(h)

    # Mask padded action columns so they don't contribute to the softmax normalizer.
    col = jax.lax.broadcasted_iota(jnp.int32, h.shape, dimension=1)
    h = jnp.where(col < n_actions, h, _NEG_INF)

    # Numerically stable log_softmax over the last (lane) axis.
    m = jnp.max(h, axis=-1, keepdims=True)
    s = h - m
    lse = jnp.log(jnp.sum(jnp.exp(s), axis=-1, keepdims=True))
    out_ref[...] = (s - lse).astype(out_ref.dtype)


def mlp_policy_forward(obs, params, *, block_b=512, lane=128):
    """obs: [B, sizes[0]]; params: list of (W[in,out], b[1,out]) per Linear layer.

    Returns log-probabilities of shape [B, nA] (nA = last layer's output width).
    """
    n_layers = len(params)
    B, d_in = obs.shape
    n_actions = params[-1][0].shape[1]

    # Lane-pad every feature dimension (input, hiddens, actions) to a multiple of 128.
    dims = [d_in] + [w.shape[1] for w, _ in params]
    pdims = [_round_up(d, lane) for d in dims]

    # Batch tile: multiple of 8 sublanes, capped at block_b; pad B up to a whole number of tiles.
    tb = min(block_b, _round_up(B, 8))
    b_pad = _round_up(B, tb)

    obs_p = jnp.pad(obs, ((0, b_pad - B), (0, pdims[0] - d_in)))
    flat_params = []
    for j, (w, b) in enumerate(params):
        w_p = jnp.pad(w, ((0, pdims[j] - w.shape[0]), (0, pdims[j + 1] - w.shape[1])))
        b_p = jnp.pad(b, ((0, 0), (0, pdims[j + 1] - b.shape[1])))
        flat_params.extend([w_p, b_p])

    kernel = functools.partial(_mlp_logsoftmax_kernel, n_layers, n_actions)

    # obs tile moves with the batch grid; weights/biases are VMEM-resident (constant index_map).
    in_specs = [pl.BlockSpec((tb, pdims[0]), lambda i: (i, 0))]
    for j in range(n_layers):
        in_specs.append(pl.BlockSpec((pdims[j], pdims[j + 1]), lambda i: (0, 0)))
        in_specs.append(pl.BlockSpec((1, pdims[j + 1]), lambda i: (0, 0)))
    out_spec = pl.BlockSpec((tb, pdims[-1]), lambda i: (i, 0))

    # Explicit VMEM budget: resident params + double-buffered in/out activation tiles
    # + headroom for intermediate activations, clamped to v7x's 64 MiB per-TC VMEM.
    param_bytes = sum(int(x.size) * x.dtype.itemsize for x in flat_params)
    max_w = max(pdims)
    act_bytes = 2 * 2 * tb * max_w * 4      # double-buffered obs + out tiles (f32)
    scratch_bytes = 4 * tb * max_w * 4      # intermediate activation headroom
    vmem_limit = int(min(max(param_bytes + act_bytes + scratch_bytes + (4 << 20), 16 << 20),
                         64 << 20))

    out = pl.pallas_call(
        kernel,
        out_shape=jax.ShapeDtypeStruct((b_pad, pdims[-1]), jnp.float32),
        grid=(b_pad // tb,),
        in_specs=in_specs,
        out_specs=out_spec,
        compiler_params=pltpu.CompilerParams(
            dimension_semantics=("parallel",),
            vmem_limit_bytes=vmem_limit,
        ),
    )(obs_p, *flat_params)

    return out[:B, :n_actions]


def init_mlp_params(key, sizes, dtype=jnp.float32):
    """Deterministic Linear-like init: W ~ U(-k, k), b ~ U(-k, k), k = 1/sqrt(fan_in)."""
    params = []
    for j in range(len(sizes) - 1):
        fan_in, fan_out = sizes[j], sizes[j + 1]
        key, kw, kb = jax.random.split(key, 3)
        bound = 1.0 / jnp.sqrt(jnp.float32(fan_in))
        w = jax.random.uniform(kw, (fan_in, fan_out), jnp.float32, -bound, bound).astype(dtype)
        b = jax.random.uniform(kb, (1, fan_out), jnp.float32, -bound, bound).astype(dtype)
        params.append((w, b))
    return params


def reference_forward(obs, params):
    h = obs
    n_layers = len(params)
    for j, (w, b) in enumerate(params):
        h = h @ w.astype(jnp.float32) + b.astype(jnp.float32)
        if j < n_layers - 1:
            h = 0.5 * h * (1.0 + jax.lax.erf(h / jnp.sqrt(2.0)))
    return jax.nn.log_softmax(h, axis=-1)


if __name__ == "__main__":
    # sizes = [obs_dim, hidden, hidden, nA] ; nA = 4 as in MLPPolicy
    sizes = [16, 32, 32, 4]
    batch = 8

    key = jax.random.PRNGKey(0)
    key, k_obs = jax.random.split(key)
    obs = jax.random.normal(k_obs, (batch, sizes[0]), jnp.float32)
    params = init_mlp_params(key, sizes)

    logp = mlp_policy_forward(obs, params)
    jax.block_until_ready(logp)

    # Sanity check against a pure-JAX reference of the same math.
    ref = reference_forward(obs, params)
    assert logp.shape == (batch, sizes[-1])
    assert jnp.allclose(logp, ref, atol=1e-5, rtol=1e-5)

    print("KERNEL_OK")
</pallas_src>

<mosaic_0001>
module attributes {stable_mosaic.version = 11 : i64} {
  func.func @_mlp_logsoftmax_kernel(%arg0: i32, %arg1: memref<8x128xf32, #tpu.memory_space<vmem>>, %arg2: memref<128x128xf32, #tpu.memory_space<vmem>>, %arg3: memref<1x128xf32, #tpu.memory_space<vmem>>, %arg4: memref<128x128xf32, #tpu.memory_space<vmem>>, %arg5: memref<1x128xf32, #tpu.memory_space<vmem>>, %arg6: memref<128x128xf32, #tpu.memory_space<vmem>>, %arg7: memref<1x128xf32, #tpu.memory_space<vmem>>, %arg8: memref<8x128xf32, #tpu.memory_space<vmem>>) attributes {dimension_semantics = [#tpu.dimension_semantics<parallel>], iteration_bounds = array<i64: 1>, scalar_prefetch = 0 : i64, scratch_operands = 0 : i64, tpu.core_type = #tpu.core_type<tc>, window_params = [{transform_indices = @transform_0, window_bounds = array<i64: 8, 128>}, {pipeline_mode = #tpu.pipeline_mode<synchronous>, transform_indices = @transform_1, window_bounds = array<i64: 128, 128>}, {pipeline_mode = #tpu.pipeline_mode<synchronous>, transform_indices = @transform_2, window_bounds = array<i64: 1, 128>}, {pipeline_mode = #tpu.pipeline_mode<synchronous>, transform_indices = @transform_3, window_bounds = array<i64: 128, 128>}, {pipeline_mode = #tpu.pipeline_mode<synchronous>, transform_indices = @transform_4, window_bounds = array<i64: 1, 128>}, {pipeline_mode = #tpu.pipeline_mode<synchronous>, transform_indices = @transform_5, window_bounds = array<i64: 128, 128>}, {pipeline_mode = #tpu.pipeline_mode<synchronous>, transform_indices = @transform_6, window_bounds = array<i64: 1, 128>}, {transform_indices = @transform_7, window_bounds = array<i64: 8, 128>}]} {
    %c0 = arith.constant 0 : index
    %c0_0 = arith.constant 0 : index
    %0 = vector.load %arg1[%c0, %c0_0] : memref<8x128xf32, #tpu.memory_space<vmem>>, vector<8x128xf32>
    %c0_1 = arith.constant 0 : index
    %c0_2 = arith.constant 0 : index
    %1 = vector.load %arg2[%c0_1, %c0_2] : memref<128x128xf32, #tpu.memory_space<vmem>>, vector<128x128xf32>
    %c0_3 = arith.constant 0 : index
    %c0_4 = arith.constant 0 : index
    %2 = vector.load %arg3[%c0_3, %c0_4] : memref<1x128xf32, #tpu.memory_space<vmem>>, vector<1x128xf32>
    %cst = arith.constant dense<0.000000e+00> : vector<8x128xf32>
    %3 = tpu.matmul %0, %1, %cst {dimension_numbers = #tpu.dot_dimension_numbers<[1], [0], [0], [1], [0, 0, 1, 1], [], []>} : vector<8x128xf32>, vector<128x128xf32>, vector<8x128xf32> -> vector<8x128xf32>
    %4 = vector.broadcast %2 : vector<1x128xf32> to vector<8x128xf32>
    %5 = arith.addf %3, %4 : vector<8x128xf32>
    %cst_5 = arith.constant 5.000000e-01 : f32
    %6 = vector.broadcast %cst_5 : f32 to vector<8x128xf32>
    %7 = arith.mulf %6, %5 : vector<8x128xf32>
    %cst_6 = arith.constant 0.707106769 : f32
    %8 = vector.broadcast %cst_6 : f32 to vector<8x128xf32>
    %9 = arith.mulf %5, %8 : vector<8x128xf32>
    %10 = math.erf %9 : vector<8x128xf32>
    %cst_7 = arith.constant 1.000000e+00 : f32
    %11 = vector.broadcast %cst_7 : f32 to vector<8x128xf32>
    %12 = arith.addf %11, %10 : vector<8x128xf32>
    %13 = arith.mulf %7, %12 : vector<8x128xf32>
    %c0_8 = arith.constant 0 : index
    %c0_9 = arith.constant 0 : index
    %14 = vector.load %arg4[%c0_8, %c0_9] : memref<128x128xf32, #tpu.memory_space<vmem>>, vector<128x128xf32>
    %c0_10 = arith.constant 0 : index
    %c0_11 = arith.constant 0 : index
    %15 = vector.load %arg5[%c0_10, %c0_11] : memref<1x128xf32, #tpu.memory_space<vmem>>, vector<1x128xf32>
    %cst_12 = arith.constant dense<0.000000e+00> : vector<8x128xf32>
    %16 = tpu.matmul %13, %14, %cst_12 {dimension_numbers = #tpu.dot_dimension_numbers<[1], [0], [0], [1], [0, 0, 1, 1], [], []>} : vector<8x128xf32>, vector<128x128xf32>, vector<8x128xf32> -> vector<8x128xf32>
    %17 = vector.broadcast %15 : vector<1x128xf32> to vector<8x128xf32>
    %18 = arith.addf %16, %17 : vector<8x128xf32>
    %cst_13 = arith.constant 5.000000e-01 : f32
    %19 = vector.broadcast %cst_13 : f32 to vector<8x128xf32>
    %20 = arith.mulf %19, %18 : vector<8x128xf32>
    %cst_14 = arith.constant 0.707106769 : f32
    %21 = vector.broadcast %cst_14 : f32 to vector<8x128xf32>
    %22 = arith.mulf %18, %21 : vector<8x128xf32>
    %23 = math.erf %22 : vector<8x128xf32>
    %cst_15 = arith.constant 1.000000e+00 : f32
    %24 = vector.broadcast %cst_15 : f32 to vector<8x128xf32>
    %25 = arith.addf %24, %23 : vector<8x128xf32>
    %26 = arith.mulf %20, %25 : vector<8x128xf32>
    %c0_16 = arith.constant 0 : index
    %c0_17 = arith.constant 0 : index
    %27 = vector.load %arg6[%c0_16, %c0_17] : memref<128x128xf32, #tpu.memory_space<vmem>>, vector<128x128xf32>
    %c0_18 = arith.constant 0 : index
    %c0_19 = arith.constant 0 : index
    %28 = vector.load %arg7[%c0_18, %c0_19] : memref<1x128xf32, #tpu.memory_space<vmem>>, vector<1x128xf32>
    %cst_20 = arith.constant dense<0.000000e+00> : vector<8x128xf32>
    %29 = tpu.matmul %26, %27, %cst_20 {dimension_numbers = #tpu.dot_dimension_numbers<[1], [0], [0], [1], [0, 0, 1, 1], [], []>} : vector<8x128xf32>, vector<128x128xf32>, vector<8x128xf32> -> vector<8x128xf32>
    %30 = vector.broadcast %28 : vector<1x128xf32> to vector<8x128xf32>
    %31 = arith.addf %29, %30 : vector<8x128xf32>
    %32 = tpu.iota {dimensions = array<i32: 1>} : vector<8x128xi32>
    %c4_i32 = arith.constant 4 : i32
    %33 = vector.broadcast %c4_i32 : i32 to vector<8x128xi32>
    %34 = arith.cmpi slt, %32, %33 : vector<8x128xi32>
    %cst_21 = arith.constant -1.000000e+30 : f32
    %35 = vector.broadcast %cst_21 : f32 to vector<8x128xf32>
    %36 = arith.select %34, %31, %35 : vector<8x128xi1>, vector<8x128xf32>
    %cst_22 = arith.constant dense<0xFF800000> : vector<8xf32>
    %37 = vector.multi_reduction <maximumf>, %36, %cst_22 [1] : vector<8x128xf32> to vector<8xf32>
    %38 = vector.shape_cast %37 : vector<8xf32> to vector<8x1xf32>
    %39 = vector.broadcast %38 : vector<8x1xf32> to vector<8x128xf32>
    %40 = arith.subf %36, %39 : vector<8x128xf32>
    %41 = math.exp %40 : vector<8x128xf32>
    %cst_23 = arith.constant dense<0.000000e+00> : vector<8xf32>
    %42 = vector.multi_reduction <add>, %41, %cst_23 [1] : vector<8x128xf32> to vector<8xf32>
    %43 = vector.shape_cast %42 : vector<8xf32> to vector<8x1xf32>
    %44 = math.log %43 : vector<8x1xf32>
    %45 = vector.broadcast %44 : vector<8x1xf32> to vector<8x128xf32>
    %46 = arith.subf %40, %45 : vector<8x128xf32>
    %c0_24 = arith.constant 0 : index
    %c0_25 = arith.constant 0 : index
    %47 = vector.load %arg8[%c0_24, %c0_25] : memref<8x128xf32, #tpu.memory_space<vmem>>, vector<8x128xf32>
    tpu.vector_store %arg8[%c0_24, %c0_25], %46 {strides = array<i32>} : memref<8x128xf32, #tpu.memory_space<vmem>>, vector<8x128xf32>,
    return
  }
  func.func @transform_0(%arg0: i32) -> (i32, i32) {
    %c0_i32 = arith.constant 0 : i32
    %c0_i32_0 = arith.constant 0 : i32
    return %arg0, %c0_i32 : i32, i32
  }
  func.func @transform_1(%arg0: i32) -> (i32, i32) {
    %c0_i32 = arith.constant 0 : i32
    %c0_i32_0 = arith.constant 0 : i32
    %c0_i32_1 = arith.constant 0 : i32
    return %c0_i32, %c0_i32_0 : i32, i32
  }
  func.func @transform_2(%arg0: i32) -> (i32, i32) {
    %c0_i32 = arith.constant 0 : i32
    %c0_i32_0 = arith.constant 0 : i32
    %c0_i32_1 = arith.constant 0 : i32
    return %c0_i32, %c0_i32_0 : i32, i32
  }
  func.func @transform_3(%arg0: i32) -> (i32, i32) {
    %c0_i32 = arith.constant 0 : i32
    %c0_i32_0 = arith.constant 0 : i32
    %c0_i32_1 = arith.constant 0 : i32
    return %c0_i32, %c0_i32_0 : i32, i32
  }
  func.func @transform_4(%arg0: i32) -> (i32, i32) {
    %c0_i32 = arith.constant 0 : i32
    %c0_i32_0 = arith.constant 0 : i32
    %c0_i32_1 = arith.constant 0 : i32
    return %c0_i32, %c0_i32_0 : i32, i32
  }
  func.func @transform_5(%arg0: i32) -> (i32, i32) {
    %c0_i32 = arith.constant 0 : i32
    %c0_i32_0 = arith.constant 0 : i32
    %c0_i32_1 = arith.constant 0 : i32
    return %c0_i32, %c0_i32_0 : i32, i32
  }
  func.func @transform_6(%arg0: i32) -> (i32, i32) {
    %c0_i32 = arith.constant 0 : i32
    %c0_i32_0 = arith.constant 0 : i32
    %c0_i32_1 = arith.constant 0 : i32
    return %c0_i32, %c0_i32_0 : i32, i32
  }
  func.func @transform_7(%arg0: i32) -> (i32, i32) {
    %c0_i32 = arith.constant 0 : i32
    %c0_i32_0 = arith.constant 0 : i32
    return %arg0, %c0_i32 : i32, i32
  }
}

</mosaic_0001>

<llo_original>
// kernel: tpu_custom_call.1
$region0: #{tpu_custom_call.1}
  #allocation0 [shape = 'u32[]', space=smem, size = 0x4, offset = 0x4, fixed_abs, tag = 'smem constant byte address 0x4 - core index']
  #allocation1 [shape = 'u32[144,128]{1,0:T(1,128)}', space=vmem, size = 0x12000, scoped, tag = 'internal scratch']
  %s0 = inlined_call_operand.hbm [shape: f32[8,128], index: 0, kind: input, shape index: {}]
  %s1 = inlined_call_operand.hbm [shape: f32[128,128], index: 1, kind: input, shape index: {}]
  %s2 = inlined_call_operand.vmem [shape: f32[1,128], index: 2, kind: input, shape index: {}]
  %s3 = inlined_call_operand.hbm [shape: f32[128,128], index: 3, kind: input, shape index: {}]
  %s4 = inlined_call_operand.vmem [shape: f32[1,128], index: 4, kind: input, shape index: {}]
  %s5 = inlined_call_operand.hbm [shape: f32[128,128], index: 5, kind: input, shape index: {}]
  %s6 = inlined_call_operand.vmem [shape: f32[1,128], index: 6, kind: input, shape index: {}]
  %s7 = inlined_call_operand.hbm [shape: f32[8,128], index: 7, kind: output, shape index: {}]
  %s8 = sld [smem:[#allocation0]]
  $region54: #{tpu_custom_call.1} parent=0
    _
  %s10 = ssub.s32 1, %s8
  %s11 = scalar_select 0, %s10, %s8
  $region1: #{tpu_custom_call.1} parent=0
    #allocation2 [shape = 'u8[4096]{0}', space=vmem, size = 0x1000, scoped, tag = 'input window, operand 0, single buffered']
    #allocation3 [shape = 's32[1]{0}', space=sflag, size = 0x4, scoped, tag = 'scoped memory for tpu_custom_call.1']
    #allocation4 [shape = 's32[1]{0}', space=sflag, size = 0x4, scoped, tag = 'scoped memory for tpu_custom_call.1']
    #allocation5 [shape = 'u8[65536]{0}', space=vmem, size = 0x10000, scoped, tag = 'input window, operand 1, single buffered']
    #allocation6 [shape = 's32[1]{0}', space=sflag, size = 0x4, scoped, tag = 'scoped memory for tpu_custom_call.1']
    #allocation7 [shape = 'u8[65536]{0}', space=vmem, size = 0x10000, scoped, tag = 'input window, operand 3, single buffered']
    #allocation8 [shape = 'u8[65536]{0}', space=vmem, size = 0x10000, scoped, tag = 'input window, operand 5, single buffered']
    #allocation9 [shape = 's32[1]{0}', space=sflag, size = 0x4, scoped, tag = 'scoped memory for tpu_custom_call.1']
    #allocation10 [shape = 'u8[4096]{0}', space=vmem, size = 0x1000, scoped, tag = 'output window, operand 0, single buffered']
    %12 = vsyncpa [#allocation3], 0
    %13 = vsyncpa [#allocation6], 0
    %14 = vsyncpa [#allocation9], 0
    %15 = vsyncpa [#allocation4], 0
    // Predicated region
    $region2: #{tpu_custom_call.1} parent=1 // pred_check
      _
    $region3: #{tpu_custom_call.1} parent=1 // pred_check_branch
      %17 = sbr.rel (0) target = $region5
    $region4: #{tpu_custom_call.1} parent=1 // pred_region
      %s19 = ssub.s32 128, 128
      %20 = vsyncadd [#allocation3], %s19
      %s22 = sshll.u32 [#allocation2], 4
      %s23 = int_to_ptr.vmem [resolvable:$true] %s22
      %25 = dma.hbm_to_vmem [thread:$0]  %s0, 128, %s23, [#allocation3]
    $region5: #{tpu_custom_call.1} parent=1 // pred_fallthru
      _
    // Predicated region
    $region6: #{tpu_custom_call.1} parent=1 // pred_check
      _
    $region7: #{tpu_custom_call.1} parent=1 // pred_check_branch
      %27 = sbr.rel (0) target = $region9
    $region8: #{tpu_custom_call.1} parent=1 // pred_region
      %s29 = ssub.s32 2048, 2048
      %30 = vsyncadd [#allocation6], %s29
      %s31 = sshll.u32 [#allocation5], 4
      %s32 = int_to_ptr.vmem [resolvable:$true] %s31
      %37 = dma.hbm_to_vmem [thread:$0]  %s1, 2048, %s32, [#allocation6], 128, 128, 8
    $region9: #{tpu_custom_call.1} parent=1 // pred_fallthru
      _
    // Predicated region
    $region10: #{tpu_custom_call.1} parent=1 // pred_check
      _
    $region11: #{tpu_custom_call.1} parent=1 // pred_check_branch
      %39 = sbr.rel (0) target = $region13
    $region12: #{tpu_custom_call.1} parent=1 // pred_region
      _
    $region13: #{tpu_custom_call.1} parent=1 // pred_fallthru
      _
    // Predicated region
    $region14: #{tpu_custom_call.1} parent=1 // pred_check
      _
    $region15: #{tpu_custom_call.1} parent=1 // pred_check_branch
      %41 = sbr.rel (0) target = $region17
    $region16: #{tpu_custom_call.1} parent=1 // pred_region
      %s43 = ssub.s32 2048, 2048
      %44 = vsyncadd [#allocation6], %s43
      %s45 = sshll.u32 [#allocation7], 4
      %s46 = int_to_ptr.vmem [resolvable:$true] %s45
      %51 = dma.hbm_to_vmem [thread:$0]  %s3, 2048, %s46, [#allocation6], 128, 128, 8
    $region17: #{tpu_custom_call.1} parent=1 // pred_fallthru
      _
    // Predicated region
    $region18: #{tpu_custom_call.1} parent=1 // pred_check
      _
    $region19: #{tpu_custom_call.1} parent=1 // pred_check_branch
      %53 = sbr.rel (0) target = $region21
    $region20: #{tpu_custom_call.1} parent=1 // pred_region
      _
    $region21: #{tpu_custom_call.1} parent=1 // pred_fallthru
      _
    // Predicated region
    $region22: #{tpu_custom_call.1} parent=1 // pred_check
      _
    $region23: #{tpu_custom_call.1} parent=1 // pred_check_branch
      %55 = sbr.rel (0) target = $region25
    $region24: #{tpu_custom_call.1} parent=1 // pred_region
      %s57 = ssub.s32 2048, 2048
      %58 = vsyncadd [#allocation9], %s57
      %s59 = sshll.u32 [#allocation8], 4
      %s60 = int_to_ptr.vmem [resolvable:$true] %s59
      %65 = dma.hbm_to_vmem [thread:$0]  %s5, 2048, %s60, [#allocation9], 128, 128, 8
    $region25: #{tpu_custom_call.1} parent=1 // pred_fallthru
      _
    // Predicated region
    $region26: #{tpu_custom_call.1} parent=1 // pred_check
      _
    $region27: #{tpu_custom_call.1} parent=1 // pred_check_branch
      %67 = sbr.rel (0) target = $region29
    $region28: #{tpu_custom_call.1} parent=1 // pred_region
      _
    $region29: #{tpu_custom_call.1} parent=1 // pred_fallthru
      _
    // Predicated region
    $region30: #{tpu_custom_call.1} parent=1 // pred_check
      _
    $region31: #{tpu_custom_call.1} parent=1 // pred_check_branch
      %69 = sbr.rel (0) target = $region33
    $region32: #{tpu_custom_call.1} parent=1 // pred_region
      %70 = dma.done [#allocation3], 128
    $region33: #{tpu_custom_call.1} parent=1 // pred_fallthru
      _
    // Predicated region
    $region34: #{tpu_custom_call.1} parent=1 // pred_check
      _
    $region35: #{tpu_custom_call.1} parent=1 // pred_check_branch
      %72 = sbr.rel (0) target = $region37
    $region36: #{tpu_custom_call.1} parent=1 // pred_region
      %73 = dma.done [#allocation6], 2048
    $region37: #{tpu_custom_call.1} parent=1 // pred_fallthru
      _
    // Predicated region
    $region38: #{tpu_custom_call.1} parent=1 // pred_check
      _
    $region39: #{tpu_custom_call.1} parent=1 // pred_check_branch
      %75 = sbr.rel (0) target = $region41
    $region40: #{tpu_custom_call.1} parent=1 // pred_region
      %76 = dma.done [#allocation6], 2048
    $region41: #{tpu_custom_call.1} parent=1 // pred_fallthru
      _
    // Predicated region
    $region42: #{tpu_custom_call.1} parent=1 // pred_check
      _
    $region43: #{tpu_custom_call.1} parent=1 // pred_check_branch
      %78 = sbr.rel (0) target = $region45
    $region44: #{tpu_custom_call.1} parent=1 // pred_region
      %79 = dma.done [#allocation9], 2048
    $region45: #{tpu_custom_call.1} parent=1 // pred_fallthru
      _
    %v80 = vld [vmem:[#allocation2] sm:$0xff]
    %v81 = vld [vmem:[#allocation5] sm:$0xff]
    %v82 = vld [vmem:[#allocation5 + $0x8] sm:$0xff]
    %v83 = vld [vmem:[#allocation5 + $0x10] sm:$0xff]
    %v84 = vld [vmem:[#allocation5 + $0x18] sm:$0xff]
    %v85 = vld [vmem:[#allocation5 + $0x20] sm:$0xff]
    %v86 = vld [vmem:[#allocation5 + $0x28] sm:$0xff]
    %v87 = vld [vmem:[#allocation5 + $0x30] sm:$0xff]
    %v88 = vld [vmem:[#allocation5 + $0x38] sm:$0xff]
    %v89 = vld [vmem:[#allocation5 + $0x40] sm:$0xff]
    %v90 = vld [vmem:[#allocation5 + $0x48] sm:$0xff]
    %v91 = vld [vmem:[#allocation5 + $0x50] sm:$0xff]
    %v92 = vld [vmem:[#allocation5 + $0x58] sm:$0xff]
    %v93 = vld [vmem:[#allocation5 + $0x60] sm:$0xff]
    %v94 = vld [vmem:[#allocation5 + $0x68] sm:$0xff]
    %v95 = vld [vmem:[#allocation5 + $0x70] sm:$0xff]
    %v96 = vld [vmem:[#allocation5 + $0x78] sm:$0xff]
    %v97 = vld [vmem:[%s2] sm:$0x1]
    %v99 = vlaneseq
    %v100 = vshrl.u32 %v99, 7
    %v101 = vsub.s32 0, %v100
    %v102 = vrot.slane %v97, %v101
    %104 = vmatprep.subr.mxu0 0.0
    %105 = vmatpush1.msra.mxu0 %v96
    %106 = vmatprep.subr.mxu0 0.0
    %107 = vmatpush1.msra.mxu0 %v95
    %108 = vmatprep.subr.mxu0 0.0
    %109 = vmatpush1.msra.mxu0 %v94
    %110 = vmatprep.subr.mxu0 0.0
    %111 = vmatpush1.msra.mxu0 %v93
    %112 = vmatprep.subr.mxu0 0.0
    %113 = vmatpush1.msra.mxu0 %v92
    %114 = vmatprep.subr.mxu0 0.0
    %115 = vmatpush1.msra.mxu0 %v91
    %116 = vmatprep.subr.mxu0 0.0
    %117 = vmatpush1.msra.mxu0 %v90
    %118 = vmatprep.subr.mxu0 0.0
    %119 = vmatpush1.msra.mxu0 %v89
    %120 = vmatprep.subr.mxu0 0.0
    %121 = vmatpush1.msra.mxu0 %v88
    %122 = vmatprep.subr.mxu0 0.0
    %123 = vmatpush1.msra.mxu0 %v87
    %124 = vmatprep.subr.mxu0 0.0
    %125 = vmatpush1.msra.mxu0 %v86
    %126 = vmatprep.subr.mxu0 0.0
    %127 = vmatpush1.msra.mxu0 %v85
    %128 = vmatprep.subr.mxu0 0.0
    %129 = vmatpush1.msra.mxu0 %v84
    %130 = vmatprep.subr.mxu0 0.0
    %131 = vmatpush1.msra.mxu0 %v83
    %132 = vmatprep.subr.mxu0 0.0
    %133 = vmatpush1.msra.mxu0 %v82
    %134 = vmatprep.subr.mxu0 0.0
    %135 = vmatpush1.msra.mxu0 %v81
    %136 = vmatprep.subr.mxu0 0.0
    %137 = vmatpush2.msra.mxu0 0.0
    %138 = vmatprep.subr.mxu0 0.0
    %139 = vmatpush2.msra.mxu0 0.0
    %140 = vmatprep.subr.mxu0 0.0
    %141 = vmatpush2.msra.mxu0 0.0
    %142 = vmatprep.subr.mxu0 0.0
    %143 = vmatpush2.msra.mxu0 0.0
    %144 = vmatprep.subr.mxu0 0.0
    %145 = vmatpush2.msra.mxu0 0.0
    %146 = vmatprep.subr.mxu0 0.0
    %147 = vmatpush2.msra.mxu0 0.0
    %148 = vmatprep.subr.mxu0 0.0
    %149 = vmatpush2.msra.mxu0 0.0
    %150 = vmatprep.subr.mxu0 0.0
    %151 = vmatpush2.msra.mxu0 0.0
    %152 = vmatprep.subr.mxu0 0.0
    %153 = vmatpush2.msra.mxu0 0.0
    %154 = vmatprep.subr.mxu0 0.0
    %155 = vmatpush2.msra.mxu0 0.0
    %156 = vmatprep.subr.mxu0 0.0
    %157 = vmatpush2.msra.mxu0 0.0
    %158 = vmatprep.subr.mxu0 0.0
    %159 = vmatpush2.msra.mxu0 0.0
    %160 = vmatprep.subr.mxu0 0.0
    %161 = vmatpush2.msra.mxu0 0.0
    %162 = vmatprep.subr.mxu0 0.0
    %163 = vmatpush2.msra.mxu0 0.0
    %164 = vmatprep.subr.mxu0 0.0
    %165 = vmatpush2.msra.mxu0 0.0
    %166 = vmatprep.subr.mxu0 0.0
    %167 = vmatpush2.msra.mxu0 0.0
    %168 = vmatprep.mubr.f32.mxu0 0.0
    %169 = vmatmul.mubr.f32.gmra.mxu0 %v80
    %v170 = vpop.f32.mrf.mxu0
    %v171 = vadd.f32 %v102, %v170
    %v172 = vpop.f32.mrf.mxu0
    %173 = vdwg.mxu0
    %v174 = vmul.f32 %v171, 0.5
    %v175 = vmul.f32 %v171, 0.70710677
    %v176 = verf.f32.pop %v175
    %v177 = vadd.f32 %v176, 1.0
    %v178 = vmul.f32 %v174, %v177
    %v179 = vld [vmem:[#allocation7] sm:$0xff]
    %v180 = vld [vmem:[#allocation7 + $0x8] sm:$0xff]
    %v181 = vld [vmem:[#allocation7 + $0x10] sm:$0xff]
    %v182 = vld [vmem:[#allocation7 + $0x18] sm:$0xff]
    %v183 = vld [vmem:[#allocation7 + $0x20] sm:$0xff]
    %v184 = vld [vmem:[#allocation7 + $0x28] sm:$0xff]
    %v185 = vld [vmem:[#allocation7 + $0x30] sm:$0xff]
    %v186 = vld [vmem:[#allocation7 + $0x38] sm:$0xff]
    %v187 = vld [vmem:[#allocation7 + $0x40] sm:$0xff]
    %v188 = vld [vmem:[#allocation7 + $0x48] sm:$0xff]
    %v189 = vld [vmem:[#allocation7 + $0x50] sm:$0xff]
    %v190 = vld [vmem:[#allocation7 + $0x58] sm:$0xff]
    %v191 = vld [vmem:[#allocation7 + $0x60] sm:$0xff]
    %v192 = vld [vmem:[#allocation7 + $0x68] sm:$0xff]
    %v193 = vld [vmem:[#allocation7 + $0x70] sm:$0xff]
    %v194 = vld [vmem:[#allocation7 + $0x78] sm:$0xff]
    %v195 = vld [vmem:[%s4] sm:$0x1]
    %v197 = vlaneseq
    %v198 = vshrl.u32 %v197, 7
    %v199 = vsub.s32 0, %v198
    %v200 = vrot.slane %v195, %v199
    %202 = vmatprep.subr.mxu0 0.0
    %203 = vmatpush1.msra.mxu0 %v194
    %204 = vmatprep.subr.mxu0 0.0
    %205 = vmatpush1.msra.mxu0 %v193
    %206 = vmatprep.subr.mxu0 0.0
    %207 = vmatpush1.msra.mxu0 %v192
    %208 = vmatprep.subr.mxu0 0.0
    %209 = vmatpush1.msra.mxu0 %v191
    %210 = vmatprep.subr.mxu0 0.0
    %211 = vmatpush1.msra.mxu0 %v190
    %212 = vmatprep.subr.mxu0 0.0
    %213 = vmatpush1.msra.mxu0 %v189
    %214 = vmatprep.subr.mxu0 0.0
    %215 = vmatpush1.msra.mxu0 %v188
    %216 = vmatprep.subr.mxu0 0.0
    %217 = vmatpush1.msra.mxu0 %v187
    %218 = vmatprep.subr.mxu0 0.0
    %219 = vmatpush1.msra.mxu0 %v186
    %220 = vmatprep.subr.mxu0 0.0
    %221 = vmatpush1.msra.mxu0 %v185
    %222 = vmatprep.subr.mxu0 0.0
    %223 = vmatpush1.msra.mxu0 %v184
    %224 = vmatprep.subr.mxu0 0.0
    %225 = vmatpush1.msra.mxu0 %v183
    %226 = vmatprep.subr.mxu0 0.0
    %227 = vmatpush1.msra.mxu0 %v182
    %228 = vmatprep.subr.mxu0 0.0
    %229 = vmatpush1.msra.mxu0 %v181
    %230 = vmatprep.subr.mxu0 0.0
    %231 = vmatpush1.msra.mxu0 %v180
    %232 = vmatprep.subr.mxu0 0.0
    %233 = vmatpush1.msra.mxu0 %v179
    %234 = vmatprep.subr.mxu0 0.0
    %235 = vmatpush2.msra.mxu0 0.0
    %236 = vmatprep.subr.mxu0 0.0
    %237 = vmatpush2.msra.mxu0 0.0
    %238 = vmatprep.subr.mxu0 0.0
    %239 = vmatpush2.msra.mxu0 0.0
    %240 = vmatprep.subr.mxu0 0.0
    %241 = vmatpush2.msra.mxu0 0.0
    %242 = vmatprep.subr.mxu0 0.0
    %243 = vmatpush2.msra.mxu0 0.0
    %244 = vmatprep.subr.mxu0 0.0
    %245 = vmatpush2.msra.mxu0 0.0
    %246 = vmatprep.subr.mxu0 0.0
    %247 = vmatpush2.msra.mxu0 0.0
    %248 = vmatprep.subr.mxu0 0.0
    %249 = vmatpush2.msra.mxu0 0.0
    %250 = vmatprep.subr.mxu0 0.0
    %251 = vmatpush2.msra.mxu0 0.0
    %252 = vmatprep.subr.mxu0 0.0
    %253 = vmatpush2.msra.mxu0 0.0
    %254 = vmatprep.subr.mxu0 0.0
    %255 = vmatpush2.msra.mxu0 0.0
    %256 = vmatprep.subr.mxu0 0.0
    %257 = vmatpush2.msra.mxu0 0.0
    %258 = vmatprep.subr.mxu0 0.0
    %259 = vmatpush2.msra.mxu0 0.0
    %260 = vmatprep.subr.mxu0 0.0
    %261 = vmatpush2.msra.mxu0 0.0
    %262 = vmatprep.subr.mxu0 0.0
    %263 = vmatpush2.msra.mxu0 0.0
    %264 = vmatprep.subr.mxu0 0.0
    %265 = vmatpush2.msra.mxu0 0.0
    %266 = vmatprep.mubr.f32.mxu0 0.0
    %267 = vmatmul.mubr.f32.gmra.mxu0 %v178
    %v268 = vpop.f32.mrf.mxu0
    %v269 = vadd.f32 %v200, %v268
    %v270 = vpop.f32.mrf.mxu0
    %271 = vdwg.mxu0
    %v272 = vmul.f32 %v269, 0.5
    %v273 = vmul.f32 %v269, 0.70710677
    %v274 = verf.f32.pop %v273
    %v275 = vadd.f32 %v274, 1.0
    %v276 = vmul.f32 %v272, %v275
    %v277 = vld [vmem:[#allocation8] sm:$0xff]
    %v278 = vld [vmem:[#allocation8 + $0x8] sm:$0xff]
    %v279 = vld [vmem:[#allocation8 + $0x10] sm:$0xff]
    %v280 = vld [vmem:[#allocation8 + $0x18] sm:$0xff]
    %v281 = vld [vmem:[#allocation8 + $0x20] sm:$0xff]
    %v282 = vld [vmem:[#allocation8 + $0x28] sm:$0xff]
    %v283 = vld [vmem:[#allocation8 + $0x30] sm:$0xff]
    %v284 = vld [vmem:[#allocation8 + $0x38] sm:$0xff]
    %v285 = vld [vmem:[#allocation8 + $0x40] sm:$0xff]
    %v286 = vld [vmem:[#allocation8 + $0x48] sm:$0xff]
    %v287 = vld [vmem:[#allocation8 + $0x50] sm:$0xff]
    %v288 = vld [vmem:[#allocation8 + $0x58] sm:$0xff]
    %v289 = vld [vmem:[#allocation8 + $0x60] sm:$0xff]
    %v290 = vld [vmem:[#allocation8 + $0x68] sm:$0xff]
    %v291 = vld [vmem:[#allocation8 + $0x70] sm:$0xff]
    %v292 = vld [vmem:[#allocation8 + $0x78] sm:$0xff]
    %v293 = vld [vmem:[%s6] sm:$0x1]
    %v295 = vlaneseq
    %v296 = vshrl.u32 %v295, 7
    %v297 = vsub.s32 0, %v296
    %v298 = vrot.slane %v293, %v297
    %300 = vmatprep.subr.mxu0 0.0
    %301 = vmatpush1.msra.mxu0 %v292
    %302 = vmatprep.subr.mxu0 0.0
    %303 = vmatpush1.msra.mxu0 %v291
    %304 = vmatprep.subr.mxu0 0.0
    %305 = vmatpush1.msra.mxu0 %v290
    %306 = vmatprep.subr.mxu0 0.0
    %307 = vmatpush1.msra.mxu0 %v289
    %308 = vmatprep.subr.mxu0 0.0
    %309 = vmatpush1.msra.mxu0 %v288
    %310 = vmatprep.subr.mxu0 0.0
    %311 = vmatpush1.msra.mxu0 %v287
    %312 = vmatprep.subr.mxu0 0.0
    %313 = vmatpush1.msra.mxu0 %v286
    %314 = vmatprep.subr.mxu0 0.0
    %315 = vmatpush1.msra.mxu0 %v285
    %316 = vmatprep.subr.mxu0 0.0
    %317 = vmatpush1.msra.mxu0 %v284
    %318 = vmatprep.subr.mxu0 0.0
    %319 = vmatpush1.msra.mxu0 %v283
    %320 = vmatprep.subr.mxu0 0.0
    %321 = vmatpush1.msra.mxu0 %v282
    %322 = vmatprep.subr.mxu0 0.0
    %323 = vmatpush1.msra.mxu0 %v281
    %324 = vmatprep.subr.mxu0 0.0
    %325 = vmatpush1.msra.mxu0 %v280
    %326 = vmatprep.subr.mxu0 0.0
    %327 = vmatpush1.msra.mxu0 %v279
    %328 = vmatprep.subr.mxu0 0.0
    %329 = vmatpush1.msra.mxu0 %v278
    %330 = vmatprep.subr.mxu0 0.0
    %331 = vmatpush1.msra.mxu0 %v277
    %332 = vmatprep.subr.mxu0 0.0
    %333 = vmatpush2.msra.mxu0 0.0
    %334 = vmatprep.subr.mxu0 0.0
    %335 = vmatpush2.msra.mxu0 0.0
    %336 = vmatprep.subr.mxu0 0.0
    %337 = vmatpush2.msra.mxu0 0.0
    %338 = vmatprep.subr.mxu0 0.0
    %339 = vmatpush2.msra.mxu0 0.0
    %340 = vmatprep.subr.mxu0 0.0
    %341 = vmatpush2.msra.mxu0 0.0
    %342 = vmatprep.subr.mxu0 0.0
    %343 = vmatpush2.msra.mxu0 0.0
    %344 = vmatprep.subr.mxu0 0.0
    %345 = vmatpush2.msra.mxu0 0.0
    %346 = vmatprep.subr.mxu0 0.0
    %347 = vmatpush2.msra.mxu0 0.0
    %348 = vmatprep.subr.mxu0 0.0
    %349 = vmatpush2.msra.mxu0 0.0
    %350 = vmatprep.subr.mxu0 0.0
    %351 = vmatpush2.msra.mxu0 0.0
    %352 = vmatprep.subr.mxu0 0.0
    %353 = vmatpush2.msra.mxu0 0.0
    %354 = vmatprep.subr.mxu0 0.0
    %355 = vmatpush2.msra.mxu0 0.0
    %356 = vmatprep.subr.mxu0 0.0
    %357 = vmatpush2.msra.mxu0 0.0
    %358 = vmatprep.subr.mxu0 0.0
    %359 = vmatpush2.msra.mxu0 0.0
    %360 = vmatprep.subr.mxu0 0.0
    %361 = vmatpush2.msra.mxu0 0.0
    %362 = vmatprep.subr.mxu0 0.0
    %363 = vmatpush2.msra.mxu0 0.0
    %364 = vmatprep.mubr.f32.mxu0 0.0
    %365 = vmatmul.mubr.f32.gmra.mxu0 %v276
    %v366 = vpop.f32.mrf.mxu0
    %v367 = vadd.f32 %v298, %v366
    %v368 = vpop.f32.mrf.mxu0
    %369 = vdwg.mxu0
    %v370 = vlaneseq
    %v371 = vand.u32 %v370, 127
    %vm372 = vcmp.lt.s32.totalorder %v371, 4
    %v373 = vsel %vm372, %v367, -1e+30
    %374 = vmax.xlane.f32.xlu0 %v373
    %v375 = vpop.xlane.xlu0 %374
    %v376 = vsub.f32 %v373, %v375
    %v377 = vmul.f32 %v376, 1.442695
    %v378 = vpow.pop %v377
    %379 = vadd.xlane.f32.xlu0 %v378
    %v380 = vpop.xlane.xlu0 %379
    %v381 = vlog2.pop %v380
    %v382 = vmul.f32 %v381, 0.6931472
    %v383 = vsub.f32 %v376, %v382
    %384 = vst [vmem:[#allocation10] sm:$0xff] %v383
    // Predicated region
    $region46: #{tpu_custom_call.1} parent=1 // pred_check
      _
    $region47: #{tpu_custom_call.1} parent=1 // pred_check_branch
      %386 = sbr.rel (0) target = $region49
    $region48: #{tpu_custom_call.1} parent=1 // pred_region
      %s388 = ssub.s32 128, 128
      %389 = vsyncadd [#allocation4], %s388
      %s391 = sshll.u32 [#allocation10], 4
      %s392 = int_to_ptr.vmem [resolvable:$true] %s391
      %394 = dma.vmem_to_hbm [thread:$0]  %s392, 128, %s7, [#allocation4]
    $region49: #{tpu_custom_call.1} parent=1 // pred_fallthru
      _
    // Predicated region
    $region50: #{tpu_custom_call.1} parent=1 // pred_check
      _
    $region51: #{tpu_custom_call.1} parent=1 // pred_check_branch
      %396 = sbr.rel (0) target = $region53
    $region52: #{tpu_custom_call.1} parent=1 // pred_region
      %397 = dma.done [#allocation4], 128
    $region53: #{tpu_custom_call.1} parent=1 // pred_fallthru
      _
    %398 = vsyncpa [#allocation3], 1
    %399 = vsyncpa [#allocation6], 1
    %400 = vsyncpa [#allocation9], 1
    %401 = vsyncpa [#allocation4], 1

</llo_original>
